<compile_context>
chip_gen: v5e
topology: v5e:2x2
jax: 0.10.0
libtpu: 0.0.40
codegen_flags: <defaults>
</compile_context>

<pallas_src>
import functools

import jax
import jax.numpy as jnp
import numpy as np
from jax import lax
from jax.experimental import pallas as pl
from jax.experimental.pallas import tpu as pltpu

N_BITS = 8
N_LEVELS = 2 ** N_BITS  # 256
QMAX = float(N_LEVELS - 1)  # 255.0


# ----------------------------------------------------------------------------
# Quantizer parameter init (UniformAffineQuantizer, scale_method='max',
# symmetric=False, channel_wise=False, always_zero=False) -- scalar glue.
# ----------------------------------------------------------------------------
def max_quant_params(x):
    x_min = jnp.minimum(jnp.min(x), 0.0)
    # delta uses the *unclamped* min/max, exactly as the PyTorch code does.
    delta = (jnp.max(x) - jnp.min(x)) / float(N_LEVELS - 1)
    delta = jnp.maximum(delta, 1e-8)
    zero_point = jnp.round(-x_min / delta)  # no clamp in the 'max' branch
    return delta.astype(jnp.float32), zero_point.astype(jnp.float32)


# ----------------------------------------------------------------------------
# Kernel 1: activation fake-quant -> bf16 integer codes (q - zp)
# ----------------------------------------------------------------------------
def _act_quant_kernel(scal_ref, x_ref, o_ref):
    # scal_ref (SMEM f32[2]) = [inv_delta_act, zp_act]
    inv_da = scal_ref[0]
    za = scal_ref[1]
    x = x_ref[...]
    q = jnp.clip(jnp.round(x * inv_da) + za, 0.0, QMAX)
    o_ref[...] = (q - za).astype(jnp.bfloat16)


def act_fake_quant_codes(act_scalars, x):
    """Elementwise fake-quant to integer codes, returned in x.shape (bf16)."""
    shape = x.shape
    total = x.size
    LANE = 128
    flat = x.reshape(-1)
    pad = (-total) % (8 * LANE)
    if pad:
        flat = jnp.pad(flat, (0, pad))
    rows = flat.shape[0] // LANE
    x2 = flat.reshape(rows, LANE)

    tile_r = min(rows, 1024)
    rpad = (-rows) % tile_r
    if rpad:
        x2 = jnp.pad(x2, ((0, rpad), (0, 0)))
    rows_p = x2.shape[0]

    out = pl.pallas_call(
        _act_quant_kernel,
        out_shape=jax.ShapeDtypeStruct((rows_p, LANE), jnp.bfloat16),
        grid=(rows_p // tile_r,),
        in_specs=[
            pl.BlockSpec(memory_space=pltpu.SMEM),            # scalars
            pl.BlockSpec((tile_r, LANE), lambda i: (i, 0)),   # x tile
        ],
        out_specs=pl.BlockSpec((tile_r, LANE), lambda i: (i, 0)),
        compiler_params=pltpu.CompilerParams(
            dimension_semantics=("parallel",)),
    )(act_scalars, x2)
    return out.reshape(-1)[:total].reshape(shape)


# ----------------------------------------------------------------------------
# Kernel 2: fq(W)[OC,K] @ act_codes[K,M] * (da*dw) + bias  (lane-dense output)
# ----------------------------------------------------------------------------
def _quant_matmul_kernel(scal_ref, w_ref, a_ref, b_ref, o_ref):
    # scal_ref (SMEM f32[3]) = [inv_delta_w, zp_w, delta_act*delta_w]
    inv_dw = scal_ref[0]
    zw = scal_ref[1]
    scale = scal_ref[2]

    # Weight fake-quant -> integer codes (f32 VPU math, bf16 MXU operand).
    w = w_ref[...]                                              # [OC, K] f32
    qw = (jnp.clip(jnp.round(w * inv_dw) + zw, 0.0, QMAX) - zw)
    qw = qw.astype(jnp.bfloat16)

    qa = a_ref[...]                                             # [K, tm] bf16
    acc = jnp.dot(qw, qa, preferred_element_type=jnp.float32)   # [OC, tm] f32
    o_ref[...] = (acc * scale + b_ref[...]).astype(o_ref.dtype)


def quant_matmul_T(mm_scalars, w_oc_k, a_codes_T, bias_col, *, tile_m=512):
    """w_oc_k: [OC, K] f32, a_codes_T: [K, M] bf16, bias_col: [OC, 1] f32
       -> out_T [OC, M] f32."""
    OC, K = w_oc_k.shape
    _, M = a_codes_T.shape

    m_pad = (-M) % tile_m
    if m_pad:
        a_codes_T = jnp.pad(a_codes_T, ((0, 0), (0, m_pad)))
    Mp = a_codes_T.shape[1]
    grid = (Mp // tile_m,)   # M=512, tile_m=512 -> single grid step

    out = pl.pallas_call(
        _quant_matmul_kernel,
        out_shape=jax.ShapeDtypeStruct((OC, Mp), jnp.float32),
        grid=grid,
        in_specs=[
            pl.BlockSpec(memory_space=pltpu.SMEM),              # scalars
            pl.BlockSpec((OC, K), lambda i: (0, 0)),            # weight (resident)
            pl.BlockSpec((K, tile_m), lambda i: (0, i)),        # act codes tile
            pl.BlockSpec((OC, 1), lambda i: (0, 0)),            # bias column
        ],
        out_specs=pl.BlockSpec((OC, tile_m), lambda i: (0, i)),
        compiler_params=pltpu.CompilerParams(
            dimension_semantics=("parallel",)),
    )(mm_scalars, w_oc_k, a_codes_T, bias_col)
    return out[:, :M]


# ----------------------------------------------------------------------------
# im2col glue producing A.T = [K, M] directly (K = C*KH*KW, M = N*OH*OW).
# Zero-padding the *codes* is exactly "conv zero-pads the quantized input".
# ----------------------------------------------------------------------------
def im2col_T(x, kh, kw, stride, padding, dilation):
    N, C, H, W = x.shape
    xp = jnp.pad(x, ((0, 0), (0, 0), (padding, padding), (padding, padding)))
    OH = (H + 2 * padding - dilation * (kh - 1) - 1) // stride + 1
    OW = (W + 2 * padding - dilation * (kw - 1) - 1) // stride + 1
    cols = []
    for i in range(kh):
        for j in range(kw):
            hi, wi = i * dilation, j * dilation
            patch = xp[:, :,
                       hi:hi + stride * (OH - 1) + 1:stride,
                       wi:wi + stride * (OW - 1) + 1:stride]  # [N,C,OH,OW]
            cols.append(patch)
    cols = jnp.stack(cols, axis=0).reshape(kh, kw, N, C, OH, OW)
    cols = cols.transpose(3, 0, 1, 2, 4, 5)          # [C,kh,kw,N,OH,OW]
    return cols.reshape(C * kh * kw, N * OH * OW), OH, OW


# ----------------------------------------------------------------------------
# QuantModule.forward (weight_quant=True, act_quant=True, split=0)
# ----------------------------------------------------------------------------
@functools.partial(jax.jit, static_argnames=("stride", "padding", "dilation"))
def quant_module_forward(x, weight, bias, *, stride=1, padding=1, dilation=1):
    OC, C, KH, KW = weight.shape
    N = x.shape[0]

    # Quantizer init (act_quantizer / weight_quantizer, scale_method='max').
    delta_a, zp_a = max_quant_params(x)
    delta_w, zp_w = max_quant_params(weight)
    act_scalars = jnp.stack([1.0 / delta_a, zp_a]).astype(jnp.float32)
    mm_scalars = jnp.stack(
        [1.0 / delta_w, zp_w, delta_a * delta_w]).astype(jnp.float32)

    # 1) activation fake-quant -> integer codes (bf16), in Pallas
    codes = act_fake_quant_codes(act_scalars, x)                 # NCHW bf16

    # 2) patches transposed: A.T [K, M]; zero pad == dequant zero
    a_T, OH, OW = im2col_T(codes, KH, KW, stride, padding, dilation)

    # 3) weight fake-quant + matmul + scale + bias, in Pallas (lane-dense out)
    w_mat = weight.reshape(OC, C * KH * KW)                      # [OC, K] f32
    b_col = bias.reshape(OC, 1).astype(jnp.float32)
    out_T = quant_matmul_T(mm_scalars, w_mat, a_T, b_col)        # [OC, M]

    out = out_T.reshape(OC, N, OH, OW).transpose(1, 0, 2, 3)     # NCHW
    return out  # StraightThrough() is identity


# ----------------------------------------------------------------------------
# Pure-JAX reference (correctness check)
# ----------------------------------------------------------------------------
def _fake_quant(x, delta, zp):
    # Same reciprocal-multiply form as the kernels (== x/delta up to f32 ulp).
    q = jnp.clip(jnp.round(x * (1.0 / delta)) + zp, 0.0, QMAX)
    return (q - zp) * delta


def reference_forward(x, weight, bias, *, stride=1, padding=1, dilation=1):
    da, za = max_quant_params(x)
    dw, zw = max_quant_params(weight)
    x_dq = _fake_quant(x, da, za)
    w_dq = _fake_quant(weight, dw, zw)
    out = lax.conv_general_dilated(
        x_dq, w_dq, window_strides=(stride, stride),
        padding=((padding, padding), (padding, padding)),
        rhs_dilation=(dilation, dilation),
        dimension_numbers=("NCHW", "OIHW", "NCHW"),
        precision=lax.Precision.HIGHEST)
    return out + bias[None, :, None, None]


if __name__ == "__main__":
    key = jax.random.PRNGKey(0)
    kx, kw, kb = jax.random.split(key, 3)

    # Shapes consistent with a Conv2d(4, 8, 3, stride=1, padding=1) module.
    N, C, H, W = 2, 4, 16, 16
    OC, KH, KW = 8, 3, 3

    x = jax.random.normal(kx, (N, C, H, W), dtype=jnp.float32)
    weight = 0.1 * jax.random.normal(kw, (OC, C, KH, KW), dtype=jnp.float32)
    bias = 0.05 * jax.random.normal(kb, (OC,), dtype=jnp.float32)

    out = quant_module_forward(x, weight, bias, stride=1, padding=1, dilation=1)
    out = jax.block_until_ready(out)

    ref = jax.block_until_ready(
        reference_forward(x, weight, bias, stride=1, padding=1, dilation=1))

    assert out.shape == (N, OC, H, W), out.shape
    np.testing.assert_allclose(np.asarray(out), np.asarray(ref),
                               rtol=1e-4, atol=1e-4)
    print("KERNEL_OK")
</pallas_src>

<mosaic_0001>
module attributes {stable_mosaic.version = 11 : i64} {
  func.func @_act_quant_kernel(%arg0: i32, %arg1: memref<2xf32, #tpu.memory_space<smem>>, %arg2: memref<16x128xf32, #tpu.memory_space<vmem>>, %arg3: memref<16x128xbf16, #tpu.memory_space<vmem>>) attributes {dimension_semantics = [#tpu.dimension_semantics<parallel>], iteration_bounds = array<i64: 1>, scalar_prefetch = 0 : i64, scratch_operands = 0 : i64, tpu.core_type = #tpu.core_type<tc>, window_params = [{transform_indices = @transform_0, window_bounds = array<i64: 2>}, {transform_indices = @transform_1, window_bounds = array<i64: 16, 128>}, {transform_indices = @transform_2, window_bounds = array<i64: 16, 128>}]} {
    %c0 = arith.constant 0 : index
    %0 = memref.load %arg1[%c0] : memref<2xf32, #tpu.memory_space<smem>>
    %c1 = arith.constant 1 : index
    %1 = memref.load %arg1[%c1] : memref<2xf32, #tpu.memory_space<smem>>
    %c0_0 = arith.constant 0 : index
    %c0_1 = arith.constant 0 : index
    %2 = vector.load %arg2[%c0_0, %c0_1] : memref<16x128xf32, #tpu.memory_space<vmem>>, vector<16x128xf32>
    %3 = vector.broadcast %0 : f32 to vector<16x128xf32>
    %4 = arith.mulf %2, %3 : vector<16x128xf32>
    %5 = math.roundeven %4 : vector<16x128xf32>
    %6 = vector.broadcast %1 : f32 to vector<16x128xf32>
    %7 = arith.addf %5, %6 : vector<16x128xf32>
    %cst = arith.constant 0.000000e+00 : f32
    %cst_2 = arith.constant 2.550000e+02 : f32
    %8 = vector.broadcast %cst : f32 to vector<16x128xf32>
    %9 = arith.maximumf %8, %7 : vector<16x128xf32>
    %10 = vector.broadcast %cst_2 : f32 to vector<16x128xf32>
    %11 = arith.minimumf %10, %9 : vector<16x128xf32>
    %12 = vector.broadcast %1 : f32 to vector<16x128xf32>
    %13 = arith.subf %11, %12 : vector<16x128xf32>
    %14 = arith.truncf %13 : vector<16x128xf32> to vector<16x128xbf16>
    %c0_3 = arith.constant 0 : index
    %c0_4 = arith.constant 0 : index
    %15 = vector.load %arg3[%c0_3, %c0_4] : memref<16x128xbf16, #tpu.memory_space<vmem>>, vector<16x128xbf16>
    tpu.vector_store %arg3[%c0_3, %c0_4], %14 {strides = array<i32>} : memref<16x128xbf16, #tpu.memory_space<vmem>>, vector<16x128xbf16>,
    return
  }
  func.func @transform_0(%arg0: i32) -> i32 {
    %c0_i32 = arith.constant 0 : i32
    %c0_i32_0 = arith.constant 0 : i32
    return %c0_i32 : i32
  }
  func.func @transform_1(%arg0: i32) -> (i32, i32) {
    %c0_i32 = arith.constant 0 : i32
    %c0_i32_0 = arith.constant 0 : i32
    return %arg0, %c0_i32 : i32, i32
  }
  func.func @transform_2(%arg0: i32) -> (i32, i32) {
    %c0_i32 = arith.constant 0 : i32
    %c0_i32_0 = arith.constant 0 : i32
    return %arg0, %c0_i32 : i32, i32
  }
}

module attributes {stable_mosaic.version = 11 : i64} {
  func.func @_quant_matmul_kernel(%arg0: i32, %arg1: memref<3xf32, #tpu.memory_space<smem>>, %arg2: memref<8x36xf32, #tpu.memory_space<vmem>>, %arg3: memref<36x512xbf16, #tpu.memory_space<vmem>>, %arg4: memref<8x1xf32, #tpu.memory_space<vmem>>, %arg5: memref<8x512xf32, #tpu.memory_space<vmem>>) attributes {dimension_semantics = [#tpu.dimension_semantics<parallel>], iteration_bounds = array<i64: 1>, scalar_prefetch = 0 : i64, scratch_operands = 0 : i64, tpu.core_type = #tpu.core_type<tc>, window_params = [{transform_indices = @transform_0, window_bounds = array<i64: 3>}, {pipeline_mode = #tpu.pipeline_mode<synchronous>, transform_indices = @transform_1, window_bounds = array<i64: 8, 36>}, {transform_indices = @transform_2, window_bounds = array<i64: 36, 512>}, {pipeline_mode = #tpu.pipeline_mode<synchronous>, transform_indices = @transform_3, window_bounds = array<i64: 8, 1>}, {transform_indices = @transform_4, window_bounds = array<i64: 8, 512>}]} {
    %c0 = arith.constant 0 : index
    %0 = memref.load %arg1[%c0] : memref<3xf32, #tpu.memory_space<smem>>
    %c1 = arith.constant 1 : index
    %1 = memref.load %arg1[%c1] : memref<3xf32, #tpu.memory_space<smem>>
    %c2 = arith.constant 2 : index
    %2 = memref.load %arg1[%c2] : memref<3xf32, #tpu.memory_space<smem>>
    %c0_0 = arith.constant 0 : index
    %c0_1 = arith.constant 0 : index
    %3 = vector.load %arg2[%c0_0, %c0_1] : memref<8x36xf32, #tpu.memory_space<vmem>>, vector<8x36xf32>
    %4 = vector.broadcast %0 : f32 to vector<8x36xf32>
    %5 = arith.mulf %3, %4 : vector<8x36xf32>
    %6 = math.roundeven %5 : vector<8x36xf32>
    %7 = vector.broadcast %1 : f32 to vector<8x36xf32>
    %8 = arith.addf %6, %7 : vector<8x36xf32>
    %cst = arith.constant 0.000000e+00 : f32
    %cst_2 = arith.constant 2.550000e+02 : f32
    %9 = vector.broadcast %cst : f32 to vector<8x36xf32>
    %10 = arith.maximumf %9, %8 : vector<8x36xf32>
    %11 = vector.broadcast %cst_2 : f32 to vector<8x36xf32>
    %12 = arith.minimumf %11, %10 : vector<8x36xf32>
    %13 = vector.broadcast %1 : f32 to vector<8x36xf32>
    %14 = arith.subf %12, %13 : vector<8x36xf32>
    %15 = arith.truncf %14 : vector<8x36xf32> to vector<8x36xbf16>
    %c0_3 = arith.constant 0 : index
    %c0_4 = arith.constant 0 : index
    %16 = vector.load %arg3[%c0_3, %c0_4] : memref<36x512xbf16, #tpu.memory_space<vmem>>, vector<36x512xbf16>
    %cst_5 = arith.constant dense<0.000000e+00> : vector<8x512xf32>
    %17 = tpu.matmul %15, %16, %cst_5 {dimension_numbers = #tpu.dot_dimension_numbers<[1], [0], [0], [1], [0, 0, 1, 1], [], []>} : vector<8x36xbf16>, vector<36x512xbf16>, vector<8x512xf32> -> vector<8x512xf32>
    %18 = vector.broadcast %2 : f32 to vector<8x512xf32>
    %19 = arith.mulf %17, %18 : vector<8x512xf32>
    %c0_6 = arith.constant 0 : index
    %c0_7 = arith.constant 0 : index
    %20 = vector.load %arg4[%c0_6, %c0_7] : memref<8x1xf32, #tpu.memory_space<vmem>>, vector<8x1xf32>
    %21 = vector.broadcast %20 : vector<8x1xf32> to vector<8x512xf32>
    %22 = arith.addf %19, %21 : vector<8x512xf32>
    %c0_8 = arith.constant 0 : index
    %c0_9 = arith.constant 0 : index
    %23 = vector.load %arg5[%c0_8, %c0_9] : memref<8x512xf32, #tpu.memory_space<vmem>>, vector<8x512xf32>
    tpu.vector_store %arg5[%c0_8, %c0_9], %22 {strides = array<i32>} : memref<8x512xf32, #tpu.memory_space<vmem>>, vector<8x512xf32>,
    return
  }
  func.func @transform_0(%arg0: i32) -> i32 {
    %c0_i32 = arith.constant 0 : i32
    %c0_i32_0 = arith.constant 0 : i32
    return %c0_i32 : i32
  }
  func.func @transform_1(%arg0: i32) -> (i32, i32) {
    %c0_i32 = arith.constant 0 : i32
    %c0_i32_0 = arith.constant 0 : i32
    %c0_i32_1 = arith.constant 0 : i32
    return %c0_i32, %c0_i32_0 : i32, i32
  }
  func.func @transform_2(%arg0: i32) -> (i32, i32) {
    %c0_i32 = arith.constant 0 : i32
    %c0_i32_0 = arith.constant 0 : i32
    return %c0_i32, %arg0 : i32, i32
  }
  func.func @transform_3(%arg0: i32) -> (i32, i32) {
    %c0_i32 = arith.constant 0 : i32
    %c0_i32_0 = arith.constant 0 : i32
    %c0_i32_1 = arith.constant 0 : i32
    return %c0_i32, %c0_i32_0 : i32, i32
  }
  func.func @transform_4(%arg0: i32) -> (i32, i32) {
    %c0_i32 = arith.constant 0 : i32
    %c0_i32_0 = arith.constant 0 : i32
    return %c0_i32, %arg0 : i32, i32
  }
}

</mosaic_0001>

<llo_original>
// kernel: quant_module_forward.2
$region0: #{quant_module_forward.2}
  #allocation0 [shape = 'u32[]', space=smem, size = 0x4, offset = 0x4, fixed_abs, tag = 'smem constant byte address 0x4 - core index']
  #allocation1 [shape = 'u32[72,128]{1,0:T(1,128)}', space=vmem, size = 0x9000, scoped, tag = 'internal scratch']
  %s0 = inlined_call_operand.vmem [shape: f32[2], index: 0, kind: input, shape index: {}]
  %s1 = inlined_call_operand.vmem [shape: f32[16,128], index: 1, kind: input, shape index: {}]
  %s2 = inlined_call_operand.vmem [shape: bf16[16,128], index: 2, kind: output, shape index: {}]
  %s3 = sld [smem:[#allocation0]]
  $region22: #{quant_module_forward.2} parent=0
    _
  %s5 = ssub.s32 1, %s3
  %s6 = scalar_select 0, %s5, %s3
  $region1: #{quant_module_forward.2} parent=0
    #allocation2 [shape = 'u8[512]{0}', space=smem, size = 0x200, scoped, tag = 'input window, operand 0, single buffered']
    #allocation3 [shape = 's32[1]{0}', space=sflag, size = 0x4, scoped, tag = 'scoped memory for quant_module_forward.2']
    %7 = vsyncpa [#allocation3], 0
    // Predicated region
    $region2: #{quant_module_forward.2} parent=1 // pred_check
      _
    $region3: #{quant_module_forward.2} parent=1 // pred_check_branch
      %9 = sbr.rel (0) target = $region5
    $region4: #{quant_module_forward.2} parent=1 // pred_region
      %11 = vsyncadd [#allocation3], 0
      %s13 = sshll.u32 %s0, 4
      %s14 = int_to_ptr.vmem [resolvable:$true] %s13
      %16 = dma.vmem_to_smem %s14, 16, [#allocation2], [#allocation3]
    $region5: #{quant_module_forward.2} parent=1 // pred_fallthru
      _
    // Predicated region
    $region6: #{quant_module_forward.2} parent=1 // pred_check
      _
    $region7: #{quant_module_forward.2} parent=1 // pred_check_branch
      %18 = sbr.rel (0) target = $region9
    $region8: #{quant_module_forward.2} parent=1 // pred_region
      _
    $region9: #{quant_module_forward.2} parent=1 // pred_fallthru
      _
    // Predicated region
    $region10: #{quant_module_forward.2} parent=1 // pred_check
      _
    $region11: #{quant_module_forward.2} parent=1 // pred_check_branch
      %20 = sbr.rel (0) target = $region13
    $region12: #{quant_module_forward.2} parent=1 // pred_region
      %22 = dma.done [#allocation3], 16
    $region13: #{quant_module_forward.2} parent=1 // pred_fallthru
      _
    %23 = sfence
    %s24 = sld [smem:[#allocation2]]
    %s25 = sld [smem:[#allocation2 + $0x1]]
    %v26 = vld [vmem:[%s1] sm:$0xff]
    %v27 = vld [vmem:[%s1 + $0x8] sm:$0xff]
    %v28 = vstv %s24
    %v29 = vmul.f32 %v26, %v28
    %v30 = vmul.f32 %v27, %v28
    %v31 = vround.ne.pseudo %v29
    %v32 = vround.ne.pseudo %v30
    %v33 = vstv %s25
    %v34 = vadd.f32 %v31, %v33
    %v35 = vadd.f32 %v32, %v33
    %v36 = vmax.f32 %v34, 0.0
    %v37 = vmax.f32 %v35, 0.0
    %v38 = vmin.f32 %v36, 255.0
    %v39 = vmin.f32 %v37, 255.0
    %v40 = vsub.f32 %v38, %v33
    %v41 = vsub.f32 %v39, %v33
    %v42 = vpack.c.bf16 %v40, %v40
    %v43 = vpack.c.bf16 %v41, %v41
    %44 = vst [vmem:[%s2] sm:$0xf] %v42
    %45 = vst [vmem:[%s2 + $0x4] sm:$0xf] %v43
    // Predicated region
    $region14: #{quant_module_forward.2} parent=1 // pred_check
      _
    $region15: #{quant_module_forward.2} parent=1 // pred_check_branch
      %47 = sbr.rel (0) target = $region17
    $region16: #{quant_module_forward.2} parent=1 // pred_region
      _
    $region17: #{quant_module_forward.2} parent=1 // pred_fallthru
      _
    // Predicated region
    $region18: #{quant_module_forward.2} parent=1 // pred_check
      _
    $region19: #{quant_module_forward.2} parent=1 // pred_check_branch
      %49 = sbr.rel (0) target = $region21
    $region20: #{quant_module_forward.2} parent=1 // pred_region
      _
    $region21: #{quant_module_forward.2} parent=1 // pred_fallthru
      _
    %50 = vsyncpa [#allocation3], 1

// kernel: quant_module_forward.3
$region0: #{quant_module_forward.3}
  #allocation0 [shape = 'u32[]', space=smem, size = 0x4, offset = 0x4, fixed_abs, tag = 'smem constant byte address 0x4 - core index']
  #allocation1 [shape = 'u32[72,128]{1,0:T(1,128)}', space=vmem, size = 0x9000, scoped, tag = 'internal scratch']
  %s0 = inlined_call_operand.vmem [shape: f32[3], index: 0, kind: input, shape index: {}]
  %s1 = inlined_call_operand.vmem [shape: f32[8,36], index: 1, kind: input, shape index: {}]
  %s2 = inlined_call_operand.vmem [shape: bf16[36,512], index: 2, kind: input, shape index: {}]
  %s3 = inlined_call_operand.vmem [shape: f32[8,1], index: 3, kind: input, shape index: {}]
  %s4 = inlined_call_operand.vmem [shape: f32[8,512], index: 4, kind: output, shape index: {}]
  %s5 = sld [smem:[#allocation0]]
  $region30: #{quant_module_forward.3} parent=0
    _
  %s7 = ssub.s32 1, %s5
  %s8 = scalar_select 0, %s7, %s5
  $region1: #{quant_module_forward.3} parent=0
    #allocation2 [shape = 'u8[512]{0}', space=smem, size = 0x200, scoped, tag = 'input window, operand 0, single buffered']
    #allocation3 [shape = 's32[1]{0}', space=sflag, size = 0x4, scoped, tag = 'scoped memory for quant_module_forward.3']
    %9 = vsyncpa [#allocation3], 0
    // Predicated region
    $region2: #{quant_module_forward.3} parent=1 // pred_check
      _
    $region3: #{quant_module_forward.3} parent=1 // pred_check_branch
      %11 = sbr.rel (0) target = $region5
    $region4: #{quant_module_forward.3} parent=1 // pred_region
      %13 = vsyncadd [#allocation3], 0
      %s15 = sshll.u32 %s0, 4
      %s16 = int_to_ptr.vmem [resolvable:$true] %s15
      %18 = dma.vmem_to_smem %s16, 16, [#allocation2], [#allocation3]
    $region5: #{quant_module_forward.3} parent=1 // pred_fallthru
      _
    // Predicated region
    $region6: #{quant_module_forward.3} parent=1 // pred_check
      _
    $region7: #{quant_module_forward.3} parent=1 // pred_check_branch
      %20 = sbr.rel (0) target = $region9
    $region8: #{quant_module_forward.3} parent=1 // pred_region
      _
    $region9: #{quant_module_forward.3} parent=1 // pred_fallthru
      _
    // Predicated region
    $region10: #{quant_module_forward.3} parent=1 // pred_check
      _
    $region11: #{quant_module_forward.3} parent=1 // pred_check_branch
      %22 = sbr.rel (0) target = $region13
    $region12: #{quant_module_forward.3} parent=1 // pred_region
      _
    $region13: #{quant_module_forward.3} parent=1 // pred_fallthru
      _
    // Predicated region
    $region14: #{quant_module_forward.3} parent=1 // pred_check
      _
    $region15: #{quant_module_forward.3} parent=1 // pred_check_branch
      %24 = sbr.rel (0) target = $region17
    $region16: #{quant_module_forward.3} parent=1 // pred_region
      _
    $region17: #{quant_module_forward.3} parent=1 // pred_fallthru
      _
    // Predicated region
    $region18: #{quant_module_forward.3} parent=1 // pred_check
      _
    $region19: #{quant_module_forward.3} parent=1 // pred_check_branch
      %26 = sbr.rel (0) target = $region21
    $region20: #{quant_module_forward.3} parent=1 // pred_region
      %28 = dma.done [#allocation3], 16
    $region21: #{quant_module_forward.3} parent=1 // pred_fallthru
      _
    %29 = sfence
    %s31 = sld [smem:[#allocation2]]
    %s32 = sld [smem:[#allocation2 + $0x1]]
    %s33 = sld [smem:[#allocation2 + $0x2]]
    %v34 = vld [vmem:[%s1] sm:$0xff]
    %v35 = vstv %s31
    %v36 = vmul.f32 %v34, %v35
    %v37 = vround.ne.pseudo %v36
    %v38 = vstv %s32
    %v39 = vadd.f32 %v37, %v38
    %v40 = vmax.f32 %v39, 0.0
    %v41 = vmin.f32 %v40, 255.0
    %v42 = vsub.f32 %v41, %v38
    %v43 = vpack.c.bf16 %v42, %v42
    %v44 = vld [vmem:[%s2] sm:$0xff]
    %v45 = vld [vmem:[%s2 + $0x8] sm:$0xff]
    %v46 = vld [vmem:[%s2 + $0x10] sm:$0xff]
    %v47 = vld [vmem:[%s2 + $0x18] sm:$0xff]
    %v48 = vld [vmem:[%s2 + $0x20] sm:$0xff]
    %v49 = vld [vmem:[%s2 + $0x28] sm:$0xff]
    %v50 = vld [vmem:[%s2 + $0x30] sm:$0xff]
    %v51 = vld [vmem:[%s2 + $0x38] sm:$0xff]
    %v52 = vld [vmem:[%s2 + $0x40] sm:$0x33]
    %v53 = vld [vmem:[%s2 + $0x48] sm:$0x33]
    %v64 = vunpack.c.l.b16 %v44
    %v65 = vunpack.c.h.b16 %v44
    %v66 = vunpack.c.l.b16 %v45
    %v67 = vunpack.c.h.b16 %v45
    %v68 = vunpack.c.l.b16 %v46
    %v69 = vunpack.c.h.b16 %v46
    %v70 = vunpack.c.l.b16 %v47
    %v71 = vunpack.c.h.b16 %v47
    %v72 = vunpack.c.l.b16 %v48
    %v73 = vunpack.c.h.b16 %v48
    %v74 = vunpack.c.l.b16 %v49
    %v75 = vunpack.c.h.b16 %v49
    %v76 = vunpack.c.l.b16 %v50
    %v77 = vunpack.c.h.b16 %v50
    %v78 = vunpack.c.l.b16 %v51
    %v79 = vunpack.c.h.b16 %v51
    %v80 = vunpack.c.l.b16 %v52
    %v81 = vunpack.c.h.b16 %v52
    %v82 = vunpack.c.l.b16 %v53
    %v83 = vunpack.c.h.b16 %v53
    %v84 = vpack.c.b16 %v68, %v64
    %v85 = vpack.c.b16 %v69, %v65
    %v86 = vpack.c.b16 %v70, %v66
    %v87 = vpack.c.b16 %v71, %v67
    %v88 = vpack.c.b16 %v76, %v72
    %v89 = vpack.c.b16 %v77, %v73
    %v90 = vpack.c.b16 %v78, %v74
    %v91 = vpack.c.b16 %v79, %v75
    %v92 = vpack.c.b16 %v80, %v80
    %v93 = vpack.c.b16 %v81, %v81
    %v94 = vpack.c.b16 %v82, %v82
    %v95 = vpack.c.b16 %v83, %v83
    %vm104 = vcmask 293888
    %v106 = vsel %vm104, %v43, 0
    %vm108 = vcmask 1041408
    %v110 = vsel %vm108, %v92, 0
    %v113 = vsel %vm108, %v93, 0
    %v116 = vsel %vm108, %v94, 0
    %v119 = vsel %vm108, %v95, 0
    %121 = vmatpush.bf16.msra.mxu0 0
    %122 = vmatpush.bf16.msra.mxu0 0
    %123 = vmatpush.bf16.msra.mxu0 0
    %124 = vmatpush.bf16.msra.mxu0 0
    %125 = vmatpush.bf16.msra.mxu0 0
    %126 = vmatpush.bf16.msra.mxu0 %v110
    %127 = vmatpush.bf16.msra.mxu0 %v88
    %128 = vmatpush.bf16.msra.mxu0 %v84
    %129 = vmatmul.bf16.gmra.mxu0 %v106
    %v130 = vpop.f32.mrf.mxu0
    %v131 = vadd.f32 0.0, %v130
    %v132 = vpop.f32.mrf.mxu0
    %133 = vdwg.mxu0
    %134 = vmatpush.bf16.msra.mxu0 0
    %135 = vmatpush.bf16.msra.mxu0 0
    %136 = vmatpush.bf16.msra.mxu0 0
    %137 = vmatpush.bf16.msra.mxu0 0
    %138 = vmatpush.bf16.msra.mxu0 0
    %139 = vmatpush.bf16.msra.mxu0 %v113
    %140 = vmatpush.bf16.msra.mxu0 %v89
    %141 = vmatpush.bf16.msra.mxu0 %v85
    %142 = vmatmul.bf16.gmra.mxu0 %v106
    %v143 = vpop.f32.mrf.mxu0
    %v144 = vadd.f32 0.0, %v143
    %v145 = vpop.f32.mrf.mxu0
    %146 = vdwg.mxu0
    %147 = vmatpush.bf16.msra.mxu0 0
    %148 = vmatpush.bf16.msra.mxu0 0
    %149 = vmatpush.bf16.msra.mxu0 0
    %150 = vmatpush.bf16.msra.mxu0 0
    %151 = vmatpush.bf16.msra.mxu0 0
    %152 = vmatpush.bf16.msra.mxu0 %v116
    %153 = vmatpush.bf16.msra.mxu0 %v90
    %154 = vmatpush.bf16.msra.mxu0 %v86
    %155 = vmatmul.bf16.gmra.mxu0 %v106
    %v156 = vpop.f32.mrf.mxu0
    %v157 = vadd.f32 0.0, %v156
    %v158 = vpop.f32.mrf.mxu0
    %159 = vdwg.mxu0
    %160 = vmatpush.bf16.msra.mxu0 0
    %161 = vmatpush.bf16.msra.mxu0 0
    %162 = vmatpush.bf16.msra.mxu0 0
    %163 = vmatpush.bf16.msra.mxu0 0
    %164 = vmatpush.bf16.msra.mxu0 0
    %165 = vmatpush.bf16.msra.mxu0 %v119
    %166 = vmatpush.bf16.msra.mxu0 %v91
    %167 = vmatpush.bf16.msra.mxu0 %v87
    %168 = vmatmul.bf16.gmra.mxu0 %v106
    %v169 = vpop.f32.mrf.mxu0
    %v170 = vadd.f32 0.0, %v169
    %v171 = vpop.f32.mrf.mxu0
    %172 = vdwg.mxu0
    %v173 = vstv %s33
    %v174 = vmul.f32 %v131, %v173
    %v175 = vmul.f32 %v144, %v173
    %v176 = vmul.f32 %v157, %v173
    %v177 = vmul.f32 %v170, %v173
    %v178 = vld [vmem:[%s3] sm:$0xff]
    %180 = vset.pattern.permute.xlu0 0
    %181 = vperm.xlu0 %180, %v178
    %v182 = vpop.permute.xlu0 %181
    %v184 = vadd.f32 %v174, %v182
    %v185 = vadd.f32 %v175, %v182
    %v186 = vadd.f32 %v176, %v182
    %v187 = vadd.f32 %v177, %v182
    %188 = vst [vmem:[%s4] sm:$0xff] %v184
    %189 = vst [vmem:[%s4 + $0x8] sm:$0xff] %v185
    %190 = vst [vmem:[%s4 + $0x10] sm:$0xff] %v186
    %191 = vst [vmem:[%s4 + $0x18] sm:$0xff] %v187
    // Predicated region
    $region22: #{quant_module_forward.3} parent=1 // pred_check
      _
    $region23: #{quant_module_forward.3} parent=1 // pred_check_branch
      %193 = sbr.rel (0) target = $region25
    $region24: #{quant_module_forward.3} parent=1 // pred_region
      _
    $region25: #{quant_module_forward.3} parent=1 // pred_fallthru
      _
    // Predicated region
    $region26: #{quant_module_forward.3} parent=1 // pred_check
      _
    $region27: #{quant_module_forward.3} parent=1 // pred_check_branch
      %195 = sbr.rel (0) target = $region29
    $region28: #{quant_module_forward.3} parent=1 // pred_region
      _
    $region29: #{quant_module_forward.3} parent=1 // pred_fallthru
      _
    %196 = vsyncpa [#allocation3], 1

</llo_original>
